<compile_context>
chip_gen: v5e
topology: v5e:2x2
jax: 0.10.0
libtpu: 0.0.40
codegen_flags: <defaults>
</compile_context>

<pallas_src>
import functools

import jax
import jax.numpy as jnp
from jax import lax
from jax.experimental import pallas as pl
from jax.experimental.pallas import tpu as pltpu

# ---------------------------------------------------------------------------
# Problem sizes (filters_dim[-1] = 32, 8 attention heads -> head_dim = 4).
# ---------------------------------------------------------------------------
B = 2          # batch
N = 8          # number of graph nodes (sequence length)
D = 32         # filters_last (embedding dim)
H = 8          # num_heads
DH = D // H    # head dim = 4


def _mha_pool_kernel(num_heads, x_ref, wqkv_ref, bqkv_ref, wo_ref, bo_ref,
                     out_ref):
    """Whole batch in one grid step.

    x_ref    : (B, N, D)   node embeddings
    wqkv_ref : (D, 128)    packed [Wq*scale | Wk | Wv | 0]
    bqkv_ref : (1, 128)    packed [bq*scale | bk | bv | 0]
    wo_ref   : (D, D)      output projection weight (x @ W layout)
    bo_ref   : (1, D)      output projection bias
    out_ref  : (B, D)      pooled graph representation
    """
    tb, n, d = x_ref.shape
    h = num_heads
    dh = d // h
    r = tb * n          # flattened (batch, node) rows       -> 16
    c = h * r           # expanded (head, batch, node) rows  -> 128
    # gcol below uses a bitwise mod; requires B*N to be a power of two.
    assert (r & (r - 1)) == 0, "B*N must be a power of two"

    x3 = x_ref[...]                                      # (B, N, D)
    x2 = x3.reshape(r, d)                                # (B*N, D)

    # ---- fused QKV projection: one lane-dense (B*N, D) @ (D, 128) matmul ----
    qkv = jnp.dot(x2, wqkv_ref[...],
                  preferred_element_type=jnp.float32) + bqkv_ref[...]
    q = qkv[:, 0 * d:1 * d]       # 1/sqrt(head_dim) already folded into W / b
    k = qkv[:, 1 * d:2 * d]
    v = qkv[:, 2 * d:3 * d]

    # ---- in-kernel selector masks (iota + compares; zero input DMAs) -------
    # Expanded row index r' = head*R + (batch*N + node), with R = B*N.
    # Head-lane mask: lane d belongs to the row's head (no integer division;
    # range tests with constant multiplies only).
    hh = lax.broadcasted_iota(jnp.int32, (h, r, d), 0)
    dd = lax.broadcasted_iota(jnp.int32, (h, r, d), 2)
    hmask = jnp.logical_and(dd >= hh * dh, dd < (hh + 1) * dh)
    hmask = hmask.astype(jnp.float32).reshape(c, d)                 # (C, D)

    # Additive cross-batch score mask: 0 for same-batch keys, -1e30 otherwise.
    qb = lax.broadcasted_iota(jnp.int32, (tb, n, r), 0)             # query batch
    kr = lax.broadcasted_iota(jnp.int32, (tb, n, r), 2)             # key row
    ok = jnp.logical_and(kr >= qb * n, kr < (qb + 1) * n).astype(jnp.float32)
    addmask = ((ok - 1.0) * 1e30).reshape(r, r)                     # (R, R)
    addmask = jnp.broadcast_to(addmask[None], (h, r, r)).reshape(c, r)

    # Head + node-mean collector: gcol[b, r'] = 1/N iff row r' is in batch b.
    rp = lax.broadcasted_iota(jnp.int32, (tb, c), 1)
    bb = lax.broadcasted_iota(jnp.int32, (tb, c), 0)
    rmod = jnp.bitwise_and(rp, r - 1)                               # r' mod (B*N)
    gcol = jnp.logical_and(rmod >= bb * n, rmod < (bb + 1) * n)
    gcol = gcol.astype(jnp.float32) * (1.0 / n)                     # (B, C)

    # ---- all heads at once: sublane-broadcast q into the expanded rows -----
    qbd = jnp.broadcast_to(q[None], (h, r, d)).reshape(c, d) * hmask  # (C, D)

    # scores of every (head, batch, query) row against every key row
    s = lax.dot_general(qbd, k, (((1,), (1,)), ((), ())),
                        preferred_element_type=jnp.float32)           # (C, R)
    s = s + addmask

    # row-wise softmax: each row is exactly one (head, batch, query) group.
    m = jnp.max(s, axis=-1, keepdims=True)
    e = jnp.exp(s - m)
    p = e * pl.reciprocal(jnp.sum(e, axis=-1, keepdims=True), approx=True)

    # per-head context, masked back to each head's lanes
    ctx = jnp.dot(p, v, preferred_element_type=jnp.float32) * hmask   # (C, D)

    # mean-over-nodes folded into the head collector (mean commutes with the
    # linear output projection), then the output projection on (B, D) only.
    gc = jnp.dot(gcol, ctx, preferred_element_type=jnp.float32)       # (B, D)
    gc = jnp.dot(gc, wo_ref[...],
                 preferred_element_type=jnp.float32) + bo_ref[...]    # (B, D)

    # ---- SimGNN pooling ----
    tg = jnp.tanh(gc)                                                 # (B, D)
    sig = jax.nn.sigmoid(jnp.sum(x3 * tg[:, None, :],
                                 axis=-1, keepdims=True))             # (B, N, 1)
    out_ref[...] = jnp.sum(x3 * sig, axis=1)                          # (B, D)


def pack_qkv_params(wq, wk, wv, bq, bk, bv, num_heads=H):
    """Pack the QKV projection ONCE (call outside the hot loop and reuse).

    Folds the 1/sqrt(head_dim) scale into the Q columns and zero-pads to a
    full 128-lane slab so the in-kernel projection is one lane-dense matmul.
    """
    d = wq.shape[0]
    dh = d // num_heads
    scale = 1.0 / (dh ** 0.5)
    qkv_cols = ((3 * d + 127) // 128) * 128
    pad = qkv_cols - 3 * d
    wqkv = jnp.concatenate(
        [wq * scale, wk, wv, jnp.zeros((d, pad), jnp.float32)], axis=1)
    bqkv = jnp.concatenate(
        [bq * scale, bk, bv, jnp.zeros((1, pad), jnp.float32)], axis=1)
    return wqkv, bqkv


@functools.partial(jax.jit, static_argnames=("num_heads",))
def multihead_attention_module(embedding, wqkv, bqkv, wo, bo, num_heads=H):
    """Reproduces MultiheadAttentionModule.forward (eval semantics).

    embedding: [B, N, D] float32; wqkv/bqkv from pack_qkv_params().
    returns (representation [B, D, 1], None)
    """
    b, n, d = embedding.shape
    qkv_cols = wqkv.shape[1]

    out = pl.pallas_call(
        functools.partial(_mha_pool_kernel, num_heads),
        out_shape=jax.ShapeDtypeStruct((b, d), jnp.float32),
        grid=(1,),                       # whole batch in one step (overhead-bound)
        in_specs=[
            pl.BlockSpec((b, n, d), lambda i: (0, 0, 0)),       # embedding
            pl.BlockSpec((d, qkv_cols), lambda i: (0, 0)),      # packed Wqkv
            pl.BlockSpec((1, qkv_cols), lambda i: (0, 0)),      # packed bias
            pl.BlockSpec((d, d), lambda i: (0, 0)),             # Wo
            pl.BlockSpec((1, d), lambda i: (0, 0)),             # bo
        ],
        out_specs=pl.BlockSpec((b, d), lambda i: (0, 0)),
        compiler_params=pltpu.CompilerParams(
            dimension_semantics=("parallel",)),
        cost_estimate=pl.CostEstimate(
            flops=470_000, transcendentals=2_300, bytes_accessed=24_000),
    )(embedding, wqkv, bqkv, wo, bo)

    # kernel emits the lane-dense (B, D) slab; PyTorch output shape is (B, D, 1)
    representation = out.reshape(b, d, 1)
    return representation, None


# ---------------------------------------------------------------------------
# Pure-JAX reference (torch.nn.MultiheadAttention eval forward + SimGNN pooling)
# ---------------------------------------------------------------------------
def _reference(embedding, wq, wk, wv, wo, bq, bk, bv, bo, num_heads=H):
    b, n, d = embedding.shape
    dh = d // num_heads
    x = embedding
    q = jnp.einsum('bnd,de->bne', x, wq) + bq
    k = jnp.einsum('bnd,de->bne', x, wk) + bk
    v = jnp.einsum('bnd,de->bne', x, wv) + bv
    q = q.reshape(b, n, num_heads, dh).transpose(0, 2, 1, 3)
    k = k.reshape(b, n, num_heads, dh).transpose(0, 2, 1, 3)
    v = v.reshape(b, n, num_heads, dh).transpose(0, 2, 1, 3)
    s = jnp.einsum('bhnd,bhmd->bhnm', q, k) / jnp.sqrt(jnp.float32(dh))
    p = jax.nn.softmax(s, axis=-1)
    ctx = jnp.einsum('bhnm,bhmd->bhnd', p, v).transpose(0, 2, 1, 3).reshape(b, n, d)
    attn_out = jnp.einsum('bnd,de->bne', ctx, wo) + bo
    gc = jnp.mean(attn_out, axis=1)
    tg = jnp.tanh(gc)
    sig = jax.nn.sigmoid(jnp.einsum('bnd,bd->bn', x, tg))[..., None]   # (B, N, 1)
    rep = jnp.einsum('bdn,bno->bdo', x.transpose(0, 2, 1), sig)        # (B, D, 1)
    return rep


if __name__ == "__main__":
    key = jax.random.PRNGKey(0)
    keys = jax.random.split(key, 6)

    embedding = jax.random.normal(keys[0], (B, N, D), dtype=jnp.float32)

    # Synthetic parameters (shapes follow torch.nn.MultiheadAttention:
    # in_proj_weight [3D, D], in_proj_bias [3D], out_proj.weight [D, D], bias [D]).
    in_proj_weight = 0.1 * jax.random.normal(keys[1], (3 * D, D), dtype=jnp.float32)
    in_proj_bias = 0.1 * jax.random.normal(keys[2], (3 * D,), dtype=jnp.float32)
    out_proj_weight = 0.1 * jax.random.normal(keys[3], (D, D), dtype=jnp.float32)
    out_proj_bias = 0.1 * jax.random.normal(keys[4], (D,), dtype=jnp.float32)

    # Transpose so kernels compute x @ W (PyTorch linear is x @ W^T).
    wq = in_proj_weight[0 * D:1 * D].T
    wk = in_proj_weight[1 * D:2 * D].T
    wv = in_proj_weight[2 * D:3 * D].T
    wo = out_proj_weight.T
    bq = in_proj_bias[0 * D:1 * D].reshape(1, D)
    bk = in_proj_bias[1 * D:2 * D].reshape(1, D)
    bv = in_proj_bias[2 * D:3 * D].reshape(1, D)
    bo = out_proj_bias.reshape(1, D)

    # One-time weight packing (hoisted out of the per-call path).
    wqkv, bqkv = pack_qkv_params(wq, wk, wv, bq, bk, bv, num_heads=H)

    rep, none_out = multihead_attention_module(embedding, wqkv, bqkv, wo, bo)
    rep = jax.block_until_ready(rep)

    ref = _reference(embedding, wq, wk, wv, wo, bq, bk, bv, bo)
    assert rep.shape == (B, D, 1), rep.shape
    assert none_out is None
    # tolerance loosened slightly vs. exact f32 because of approx reciprocal
    # (EUP vrcp, ~2^-12 relative) in the softmax denominator.
    assert jnp.allclose(rep, ref, atol=2e-3, rtol=2e-3), \
        float(jnp.max(jnp.abs(rep - ref)))

    print("KERNEL_OK")
</pallas_src>

<mosaic_0001>
module attributes {stable_mosaic.version = 11 : i64} {
  func.func @_mha_pool_kernel(%arg0: i32, %arg1: memref<2x8x32xf32, #tpu.memory_space<vmem>>, %arg2: memref<32x128xf32, #tpu.memory_space<vmem>>, %arg3: memref<1x128xf32, #tpu.memory_space<vmem>>, %arg4: memref<32x32xf32, #tpu.memory_space<vmem>>, %arg5: memref<1x32xf32, #tpu.memory_space<vmem>>, %arg6: memref<2x32xf32, #tpu.memory_space<vmem>>) attributes {dimension_semantics = [#tpu.dimension_semantics<parallel>], iteration_bounds = array<i64: 1>, scalar_prefetch = 0 : i64, scratch_operands = 0 : i64, tpu.core_type = #tpu.core_type<tc>, window_params = [{pipeline_mode = #tpu.pipeline_mode<synchronous>, transform_indices = @transform_0, window_bounds = array<i64: 2, 8, 32>}, {pipeline_mode = #tpu.pipeline_mode<synchronous>, transform_indices = @transform_1, window_bounds = array<i64: 32, 128>}, {pipeline_mode = #tpu.pipeline_mode<synchronous>, transform_indices = @transform_2, window_bounds = array<i64: 1, 128>}, {pipeline_mode = #tpu.pipeline_mode<synchronous>, transform_indices = @transform_3, window_bounds = array<i64: 32, 32>}, {pipeline_mode = #tpu.pipeline_mode<synchronous>, transform_indices = @transform_4, window_bounds = array<i64: 1, 32>}, {pipeline_mode = #tpu.pipeline_mode<synchronous>, transform_indices = @transform_5, window_bounds = array<i64: 2, 32>}]} {
    %c0 = arith.constant 0 : index
    %c0_0 = arith.constant 0 : index
    %c0_1 = arith.constant 0 : index
    %0 = vector.load %arg1[%c0, %c0_0, %c0_1] : memref<2x8x32xf32, #tpu.memory_space<vmem>>, vector<2x8x32xf32>
    %1 = vector.shape_cast %0 : vector<2x8x32xf32> to vector<16x32xf32>
    %c0_2 = arith.constant 0 : index
    %c0_3 = arith.constant 0 : index
    %2 = vector.load %arg2[%c0_2, %c0_3] : memref<32x128xf32, #tpu.memory_space<vmem>>, vector<32x128xf32>
    %cst = arith.constant dense<0.000000e+00> : vector<16x128xf32>
    %3 = tpu.matmul %1, %2, %cst {dimension_numbers = #tpu.dot_dimension_numbers<[1], [0], [0], [1], [0, 0, 1, 1], [], []>} : vector<16x32xf32>, vector<32x128xf32>, vector<16x128xf32> -> vector<16x128xf32>
    %c0_4 = arith.constant 0 : index
    %c0_5 = arith.constant 0 : index
    %4 = vector.load %arg3[%c0_4, %c0_5] : memref<1x128xf32, #tpu.memory_space<vmem>>, vector<1x128xf32>
    %5 = vector.broadcast %4 : vector<1x128xf32> to vector<16x128xf32>
    %6 = arith.addf %3, %5 : vector<16x128xf32>
    %7 = vector.extract_strided_slice %6 {offsets = [0, 0], sizes = [16, 32], strides = [1, 1]} : vector<16x128xf32> to vector<16x32xf32>
    %8 = vector.extract_strided_slice %6 {offsets = [0, 32], sizes = [16, 32], strides = [1, 1]} : vector<16x128xf32> to vector<16x32xf32>
    %9 = vector.extract_strided_slice %6 {offsets = [0, 64], sizes = [16, 32], strides = [1, 1]} : vector<16x128xf32> to vector<16x32xf32>
    %10 = tpu.iota {dimensions = array<i32: 0>} : vector<8x16x32xi32>
    %11 = tpu.iota {dimensions = array<i32: 2>} : vector<8x16x32xi32>
    %c4_i32 = arith.constant 4 : i32
    %12 = vector.broadcast %c4_i32 : i32 to vector<8x16x32xi32>
    %13 = arith.muli %10, %12 : vector<8x16x32xi32>
    %14 = arith.cmpi sge, %11, %13 : vector<8x16x32xi32>
    %c1_i32 = arith.constant 1 : i32
    %15 = vector.broadcast %c1_i32 : i32 to vector<8x16x32xi32>
    %16 = arith.addi %10, %15 : vector<8x16x32xi32>
    %c4_i32_6 = arith.constant 4 : i32
    %17 = vector.broadcast %c4_i32_6 : i32 to vector<8x16x32xi32>
    %18 = arith.muli %16, %17 : vector<8x16x32xi32>
    %19 = arith.cmpi slt, %11, %18 : vector<8x16x32xi32>
    %20 = arith.andi %14, %19 : vector<8x16x32xi1>
    %21 = arith.extui %20 : vector<8x16x32xi1> to vector<8x16x32xi32>
    %22 = arith.sitofp %21 : vector<8x16x32xi32> to vector<8x16x32xf32>
    %23 = vector.shape_cast %22 : vector<8x16x32xf32> to vector<128x32xf32>
    %24 = tpu.iota {dimensions = array<i32: 0>} : vector<2x8x16xi32>
    %25 = tpu.iota {dimensions = array<i32: 2>} : vector<2x8x16xi32>
    %c8_i32 = arith.constant 8 : i32
    %26 = vector.broadcast %c8_i32 : i32 to vector<2x8x16xi32>
    %27 = arith.muli %24, %26 : vector<2x8x16xi32>
    %28 = arith.cmpi sge, %25, %27 : vector<2x8x16xi32>
    %c1_i32_7 = arith.constant 1 : i32
    %29 = vector.broadcast %c1_i32_7 : i32 to vector<2x8x16xi32>
    %30 = arith.addi %24, %29 : vector<2x8x16xi32>
    %c8_i32_8 = arith.constant 8 : i32
    %31 = vector.broadcast %c8_i32_8 : i32 to vector<2x8x16xi32>
    %32 = arith.muli %30, %31 : vector<2x8x16xi32>
    %33 = arith.cmpi slt, %25, %32 : vector<2x8x16xi32>
    %34 = arith.andi %28, %33 : vector<2x8x16xi1>
    %35 = arith.extui %34 : vector<2x8x16xi1> to vector<2x8x16xi32>
    %36 = arith.sitofp %35 : vector<2x8x16xi32> to vector<2x8x16xf32>
    %cst_9 = arith.constant 1.000000e+00 : f32
    %37 = vector.broadcast %cst_9 : f32 to vector<2x8x16xf32>
    %38 = arith.subf %36, %37 : vector<2x8x16xf32>
    %cst_10 = arith.constant 1.000000e+30 : f32
    %39 = vector.broadcast %cst_10 : f32 to vector<2x8x16xf32>
    %40 = arith.mulf %38, %39 : vector<2x8x16xf32>
    %41 = vector.shape_cast %40 : vector<2x8x16xf32> to vector<16x16xf32>
    %42 = vector.shape_cast %41 : vector<16x16xf32> to vector<1x16x16xf32>
    %43 = vector.shape_cast %42 : vector<1x16x16xf32> to vector<1x16x16xf32>
    %44 = vector.broadcast %43 : vector<1x16x16xf32> to vector<8x16x16xf32>
    %45 = vector.shape_cast %44 : vector<8x16x16xf32> to vector<128x16xf32>
    %46 = tpu.iota {dimensions = array<i32: 1>} : vector<2x128xi32>
    %47 = tpu.iota {dimensions = array<i32: 0>} : vector<2x128xi32>
    %c15_i32 = arith.constant 15 : i32
    %48 = vector.broadcast %c15_i32 : i32 to vector<2x128xi32>
    %49 = arith.andi %46, %48 : vector<2x128xi32>
    %c8_i32_11 = arith.constant 8 : i32
    %50 = vector.broadcast %c8_i32_11 : i32 to vector<2x128xi32>
    %51 = arith.muli %47, %50 : vector<2x128xi32>
    %52 = arith.cmpi sge, %49, %51 : vector<2x128xi32>
    %c1_i32_12 = arith.constant 1 : i32
    %53 = vector.broadcast %c1_i32_12 : i32 to vector<2x128xi32>
    %54 = arith.addi %47, %53 : vector<2x128xi32>
    %c8_i32_13 = arith.constant 8 : i32
    %55 = vector.broadcast %c8_i32_13 : i32 to vector<2x128xi32>
    %56 = arith.muli %54, %55 : vector<2x128xi32>
    %57 = arith.cmpi slt, %49, %56 : vector<2x128xi32>
    %58 = arith.andi %52, %57 : vector<2x128xi1>
    %59 = arith.extui %58 : vector<2x128xi1> to vector<2x128xi32>
    %60 = arith.sitofp %59 : vector<2x128xi32> to vector<2x128xf32>
    %cst_14 = arith.constant 1.250000e-01 : f32
    %61 = vector.broadcast %cst_14 : f32 to vector<2x128xf32>
    %62 = arith.mulf %60, %61 : vector<2x128xf32>
    %63 = vector.shape_cast %7 : vector<16x32xf32> to vector<1x16x32xf32>
    %64 = vector.shape_cast %63 : vector<1x16x32xf32> to vector<1x16x32xf32>
    %65 = vector.broadcast %64 : vector<1x16x32xf32> to vector<8x16x32xf32>
    %66 = vector.shape_cast %65 : vector<8x16x32xf32> to vector<128x32xf32>
    %67 = arith.mulf %66, %23 : vector<128x32xf32>
    %cst_15 = arith.constant dense<0.000000e+00> : vector<128x16xf32>
    %68 = tpu.matmul %67, %8, %cst_15 {dimension_numbers = #tpu.dot_dimension_numbers<[1], [1], [0], [0], [0, 0, 1, 0], [], []>} : vector<128x32xf32>, vector<16x32xf32>, vector<128x16xf32> -> vector<128x16xf32>
    %69 = arith.addf %68, %45 : vector<128x16xf32>
    %cst_16 = arith.constant dense<0xFF800000> : vector<128xf32>
    %70 = vector.multi_reduction <maximumf>, %69, %cst_16 [1] : vector<128x16xf32> to vector<128xf32>
    %71 = vector.shape_cast %70 : vector<128xf32> to vector<128x1xf32>
    %72 = vector.broadcast %71 : vector<128x1xf32> to vector<128x16xf32>
    %73 = arith.subf %69, %72 : vector<128x16xf32>
    %74 = math.exp %73 : vector<128x16xf32>
    %cst_17 = arith.constant dense<0.000000e+00> : vector<128xf32>
    %75 = vector.multi_reduction <add>, %74, %cst_17 [1] : vector<128x16xf32> to vector<128xf32>
    %76 = vector.shape_cast %75 : vector<128xf32> to vector<128x1xf32>
    %77 = tpu.reciprocal %76 {approx = true} : vector<128x1xf32> -> vector<128x1xf32>
    %78 = vector.broadcast %77 : vector<128x1xf32> to vector<128x16xf32>
    %79 = arith.mulf %74, %78 : vector<128x16xf32>
    %cst_18 = arith.constant dense<0.000000e+00> : vector<128x32xf32>
    %80 = tpu.matmul %79, %9, %cst_18 {dimension_numbers = #tpu.dot_dimension_numbers<[1], [0], [0], [1], [0, 0, 1, 1], [], []>} : vector<128x16xf32>, vector<16x32xf32>, vector<128x32xf32> -> vector<128x32xf32>
    %81 = arith.mulf %80, %23 : vector<128x32xf32>
    %cst_19 = arith.constant dense<0.000000e+00> : vector<2x32xf32>
    %82 = tpu.matmul %62, %81, %cst_19 {dimension_numbers = #tpu.dot_dimension_numbers<[1], [0], [0], [1], [0, 0, 1, 1], [], []>} : vector<2x128xf32>, vector<128x32xf32>, vector<2x32xf32> -> vector<2x32xf32>
    %c0_20 = arith.constant 0 : index
    %c0_21 = arith.constant 0 : index
    %83 = vector.load %arg4[%c0_20, %c0_21] : memref<32x32xf32, #tpu.memory_space<vmem>>, vector<32x32xf32>
    %cst_22 = arith.constant dense<0.000000e+00> : vector<2x32xf32>
    %84 = tpu.matmul %82, %83, %cst_22 {dimension_numbers = #tpu.dot_dimension_numbers<[1], [0], [0], [1], [0, 0, 1, 1], [], []>} : vector<2x32xf32>, vector<32x32xf32>, vector<2x32xf32> -> vector<2x32xf32>
    %c0_23 = arith.constant 0 : index
    %c0_24 = arith.constant 0 : index
    %85 = vector.load %arg5[%c0_23, %c0_24] : memref<1x32xf32, #tpu.memory_space<vmem>>, vector<1x32xf32>
    %86 = vector.broadcast %85 : vector<1x32xf32> to vector<2x32xf32>
    %87 = arith.addf %84, %86 : vector<2x32xf32>
    %88 = math.tanh %87 : vector<2x32xf32>
    %89 = vector.shape_cast %88 : vector<2x32xf32> to vector<2x1x32xf32>
    %90 = vector.broadcast %89 : vector<2x1x32xf32> to vector<2x8x32xf32>
    %91 = arith.mulf %0, %90 : vector<2x8x32xf32>
    %cst_25 = arith.constant dense<0.000000e+00> : vector<2x8xf32>
    %92 = vector.multi_reduction <add>, %91, %cst_25 [2] : vector<2x8x32xf32> to vector<2x8xf32>
    %93 = vector.shape_cast %92 : vector<2x8xf32> to vector<2x8x1xf32>
    %94 = arith.negf %93 : vector<2x8x1xf32>
    %95 = math.exp %94 : vector<2x8x1xf32>
    %cst_26 = arith.constant 1.000000e+00 : f32
    %96 = vector.broadcast %cst_26 : f32 to vector<2x8x1xf32>
    %97 = arith.addf %96, %95 : vector<2x8x1xf32>
    %98 = arith.divf %96, %97 : vector<2x8x1xf32>
    %99 = vector.broadcast %98 : vector<2x8x1xf32> to vector<2x8x32xf32>
    %100 = arith.mulf %0, %99 : vector<2x8x32xf32>
    %cst_27 = arith.constant dense<0.000000e+00> : vector<2x32xf32>
    %101 = vector.multi_reduction <add>, %100, %cst_27 [1] : vector<2x8x32xf32> to vector<2x32xf32>
    %c0_28 = arith.constant 0 : index
    %c0_29 = arith.constant 0 : index
    %102 = vector.load %arg6[%c0_28, %c0_29] : memref<2x32xf32, #tpu.memory_space<vmem>>, vector<2x32xf32>
    tpu.vector_store %arg6[%c0_28, %c0_29], %101 {strides = array<i32>} : memref<2x32xf32, #tpu.memory_space<vmem>>, vector<2x32xf32>,
    return
  }
  func.func @transform_0(%arg0: i32) -> (i32, i32, i32) {
    %c0_i32 = arith.constant 0 : i32
    %c0_i32_0 = arith.constant 0 : i32
    %c0_i32_1 = arith.constant 0 : i32
    %c0_i32_2 = arith.constant 0 : i32
    return %c0_i32, %c0_i32_0, %c0_i32_1 : i32, i32, i32
  }
  func.func @transform_1(%arg0: i32) -> (i32, i32) {
    %c0_i32 = arith.constant 0 : i32
    %c0_i32_0 = arith.constant 0 : i32
    %c0_i32_1 = arith.constant 0 : i32
    return %c0_i32, %c0_i32_0 : i32, i32
  }
  func.func @transform_2(%arg0: i32) -> (i32, i32) {
    %c0_i32 = arith.constant 0 : i32
    %c0_i32_0 = arith.constant 0 : i32
    %c0_i32_1 = arith.constant 0 : i32
    return %c0_i32, %c0_i32_0 : i32, i32
  }
  func.func @transform_3(%arg0: i32) -> (i32, i32) {
    %c0_i32 = arith.constant 0 : i32
    %c0_i32_0 = arith.constant 0 : i32
    %c0_i32_1 = arith.constant 0 : i32
    return %c0_i32, %c0_i32_0 : i32, i32
  }
  func.func @transform_4(%arg0: i32) -> (i32, i32) {
    %c0_i32 = arith.constant 0 : i32
    %c0_i32_0 = arith.constant 0 : i32
    %c0_i32_1 = arith.constant 0 : i32
    return %c0_i32, %c0_i32_0 : i32, i32
  }
  func.func @transform_5(%arg0: i32) -> (i32, i32) {
    %c0_i32 = arith.constant 0 : i32
    %c0_i32_0 = arith.constant 0 : i32
    %c0_i32_1 = arith.constant 0 : i32
    return %c0_i32, %c0_i32_0 : i32, i32
  }
}

</mosaic_0001>

<llo_original>
// kernel: multihead_attention_module.1
$region0: #{multihead_attention_module.1}
  #allocation0 [shape = 'u32[]', space=smem, size = 0x4, offset = 0x4, fixed_abs, tag = 'smem constant byte address 0x4 - core index']
  #allocation1 [shape = 'u32[72,128]{1,0:T(1,128)}', space=vmem, size = 0x9000, scoped, tag = 'internal scratch']
  %s0 = inlined_call_operand.hbm [shape: f32[2,8,32], index: 0, kind: input, shape index: {}]
  %s1 = inlined_call_operand.hbm [shape: f32[32,128], index: 1, kind: input, shape index: {}]
  %s2 = inlined_call_operand.vmem [shape: f32[1,128], index: 2, kind: input, shape index: {}]
  %s3 = inlined_call_operand.hbm [shape: f32[32,32], index: 3, kind: input, shape index: {}]
  %s4 = inlined_call_operand.vmem [shape: f32[1,32], index: 4, kind: input, shape index: {}]
  %s5 = inlined_call_operand.hbm [shape: f32[2,32], index: 5, kind: output, shape index: {}]
  %s6 = sld [smem:[#allocation0]]
  $region42: #{multihead_attention_module.1} parent=0
    _
  %s8 = ssub.s32 1, %s6
  %s9 = scalar_select 0, %s8, %s6
  $region1: #{multihead_attention_module.1} parent=0
    #allocation2 [shape = 'u8[8192]{0}', space=vmem, size = 0x2000, scoped, tag = 'input window, operand 0, single buffered']
    #allocation3 [shape = 's32[1]{0}', space=sflag, size = 0x4, scoped, tag = 'scoped memory for multihead_attention_module.1']
    #allocation4 [shape = 's32[1]{0}', space=sflag, size = 0x4, scoped, tag = 'scoped memory for multihead_attention_module.1']
    #allocation5 [shape = 'u8[16384]{0}', space=vmem, size = 0x4000, scoped, tag = 'input window, operand 1, single buffered']
    #allocation6 [shape = 's32[1]{0}', space=sflag, size = 0x4, scoped, tag = 'scoped memory for multihead_attention_module.1']
    #allocation7 [shape = 'u8[16384]{0}', space=vmem, size = 0x4000, scoped, tag = 'input window, operand 3, single buffered']
    #allocation8 [shape = 'u8[1024]{0}', space=vmem, size = 0x400, scoped, tag = 'output window, operand 0, single buffered']
    %10 = vsyncpa [#allocation3], 0
    %11 = vsyncpa [#allocation6], 0
    %12 = vsyncpa [#allocation4], 0
    // Predicated region
    $region2: #{multihead_attention_module.1} parent=1 // pred_check
      _
    $region3: #{multihead_attention_module.1} parent=1 // pred_check_branch
      %14 = sbr.rel (0) target = $region5
    $region4: #{multihead_attention_module.1} parent=1 // pred_region
      %16 = vsyncadd [#allocation3], 0
      %s17 = sshll.u32 %s0, 4
      %s18 = int_to_ptr.hbm [resolvable:$true] %s17
      %s19 = sshll.u32 [#allocation2], 4
      %s20 = int_to_ptr.vmem [resolvable:$true] %s19
      %25 = dma.hbm_to_vmem [thread:$0]  %s18, 256, %s20, [#allocation3], 128, 128, 8
    $region5: #{multihead_attention_module.1} parent=1 // pred_fallthru
      _
    // Predicated region
    $region6: #{multihead_attention_module.1} parent=1 // pred_check
      _
    $region7: #{multihead_attention_module.1} parent=1 // pred_check_branch
      %27 = sbr.rel (0) target = $region9
    $region8: #{multihead_attention_module.1} parent=1 // pred_region
      %29 = vsyncadd [#allocation6], 0
      %s30 = sshll.u32 %s1, 4
      %s31 = int_to_ptr.hbm [resolvable:$true] %s30
      %s32 = sshll.u32 [#allocation5], 4
      %s33 = int_to_ptr.vmem [resolvable:$true] %s32
      %38 = dma.hbm_to_vmem [thread:$0]  %s31, 512, %s33, [#allocation6], 128, 128, 8
    $region9: #{multihead_attention_module.1} parent=1 // pred_fallthru
      _
    // Predicated region
    $region10: #{multihead_attention_module.1} parent=1 // pred_check
      _
    $region11: #{multihead_attention_module.1} parent=1 // pred_check_branch
      %40 = sbr.rel (0) target = $region13
    $region12: #{multihead_attention_module.1} parent=1 // pred_region
      _
    $region13: #{multihead_attention_module.1} parent=1 // pred_fallthru
      _
    // Predicated region
    $region14: #{multihead_attention_module.1} parent=1 // pred_check
      _
    $region15: #{multihead_attention_module.1} parent=1 // pred_check_branch
      %42 = sbr.rel (0) target = $region17
    $region16: #{multihead_attention_module.1} parent=1 // pred_region
      %44 = vsyncadd [#allocation6], 0
      %s45 = sshll.u32 %s3, 4
      %s46 = int_to_ptr.hbm [resolvable:$true] %s45
      %s47 = sshll.u32 [#allocation7], 4
      %s48 = int_to_ptr.vmem [resolvable:$true] %s47
      %53 = dma.hbm_to_vmem [thread:$0]  %s46, 512, %s48, [#allocation6], 128, 128, 8
    $region17: #{multihead_attention_module.1} parent=1 // pred_fallthru
      _
    // Predicated region
    $region18: #{multihead_attention_module.1} parent=1 // pred_check
      _
    $region19: #{multihead_attention_module.1} parent=1 // pred_check_branch
      %55 = sbr.rel (0) target = $region21
    $region20: #{multihead_attention_module.1} parent=1 // pred_region
      _
    $region21: #{multihead_attention_module.1} parent=1 // pred_fallthru
      _
    // Predicated region
    $region22: #{multihead_attention_module.1} parent=1 // pred_check
      _
    $region23: #{multihead_attention_module.1} parent=1 // pred_check_branch
      %57 = sbr.rel (0) target = $region25
    $region24: #{multihead_attention_module.1} parent=1 // pred_region
      %59 = dma.done [#allocation3], 256
    $region25: #{multihead_attention_module.1} parent=1 // pred_fallthru
      _
    // Predicated region
    $region26: #{multihead_attention_module.1} parent=1 // pred_check
      _
    $region27: #{multihead_attention_module.1} parent=1 // pred_check_branch
      %61 = sbr.rel (0) target = $region29
    $region28: #{multihead_attention_module.1} parent=1 // pred_region
      %63 = dma.done [#allocation6], 512
    $region29: #{multihead_attention_module.1} parent=1 // pred_fallthru
      _
    // Predicated region
    $region30: #{multihead_attention_module.1} parent=1 // pred_check
      _
    $region31: #{multihead_attention_module.1} parent=1 // pred_check_branch
      %65 = sbr.rel (0) target = $region33
    $region32: #{multihead_attention_module.1} parent=1 // pred_region
      %67 = dma.done [#allocation6], 512
    $region33: #{multihead_attention_module.1} parent=1 // pred_fallthru
      _
    %v68 = vld [vmem:[#allocation2] sm:$0xff]
    %v69 = vld [vmem:[#allocation2 + $0x8] sm:$0xff]
    %v70 = vld [vmem:[#allocation5] sm:$0xff]
    %v71 = vld [vmem:[#allocation5 + $0x8] sm:$0xff]
    %v72 = vld [vmem:[#allocation5 + $0x10] sm:$0xff]
    %v73 = vld [vmem:[#allocation5 + $0x18] sm:$0xff]
    %v74 = vld [vmem:[%s2] sm:$0x1]
    %v76 = vperm.slane %v74, 0
    %vm78 = vcmask 261120
    %v80 = vsel %vm78, %v68, 0
    %v83 = vsel %vm78, %v69, 0
    %85 = vmatpush.msra.mxu0 0.0
    %86 = vmatpush.msra.mxu0 0.0
    %87 = vmatpush.msra.mxu0 0.0
    %88 = vmatpush.msra.mxu0 0.0
    %89 = vmatpush.msra.mxu0 0.0
    %90 = vmatpush.msra.mxu0 0.0
    %91 = vmatpush.msra.mxu0 0.0
    %92 = vmatpush.msra.mxu0 0.0
    %93 = vmatpush.msra.mxu0 0.0
    %94 = vmatpush.msra.mxu0 0.0
    %95 = vmatpush.msra.mxu0 0.0
    %96 = vmatpush.msra.mxu0 0.0
    %97 = vmatpush.msra.mxu0 %v73
    %98 = vmatpush.msra.mxu0 %v72
    %99 = vmatpush.msra.mxu0 %v71
    %100 = vmatpush.msra.mxu0 %v70
    %101 = vmatmul.f32.gmra.mxu0 %v80
    %v102 = vpop.f32.mrf.mxu0
    %v103 = vadd.f32 %v76, %v102
    %104 = vmatmul.f32.gmra.mxu0 %v83
    %v105 = vpop.f32.mrf.mxu0
    %v106 = vadd.f32 %v76, %v105
    %107 = vdwg.mxu0
    %v108 = vlaneseq
    %v109 = vand.u32 %v108, 127
    %vm110 = vcmp.ge.s32.totalorder %v109, 0
    %vm111 = vcmp.ge.s32.totalorder %v109, 4
    %vm112 = vcmp.ge.s32.totalorder %v109, 8
    %vm113 = vcmp.ge.s32.totalorder %v109, 12
    %vm114 = vcmp.ge.s32.totalorder %v109, 16
    %vm115 = vcmp.ge.s32.totalorder %v109, 20
    %vm116 = vcmp.ge.s32.totalorder %v109, 24
    %vm117 = vcmp.ge.s32.totalorder %v109, 28
    %vm118 = vcmp.lt.s32.totalorder %v109, 4
    %vm119 = vcmp.lt.s32.totalorder %v109, 8
    %vm120 = vcmp.lt.s32.totalorder %v109, 12
    %vm121 = vcmp.lt.s32.totalorder %v109, 16
    %vm122 = vcmp.lt.s32.totalorder %v109, 20
    %vm123 = vcmp.lt.s32.totalorder %v109, 24
    %vm124 = vcmp.lt.s32.totalorder %v109, 28
    %vm125 = vcmp.lt.s32.totalorder %v109, 32
    %vm126 = vmand %vm110, %vm118
    %vm127 = vmand %vm111, %vm119
    %vm128 = vmand %vm112, %vm120
    %vm129 = vmand %vm113, %vm121
    %vm130 = vmand %vm114, %vm122
    %vm131 = vmand %vm115, %vm123
    %vm132 = vmand %vm116, %vm124
    %vm133 = vmand %vm117, %vm125
    %v134 = vsel %vm126, 1, 0
    %v135 = vsel %vm127, 1, 0
    %v136 = vsel %vm128, 1, 0
    %v137 = vsel %vm129, 1, 0
    %v138 = vsel %vm130, 1, 0
    %v139 = vsel %vm131, 1, 0
    %v140 = vsel %vm132, 1, 0
    %v141 = vsel %vm133, 1, 0
    %v142 = vcvt.s32.f32 %v134
    %v143 = vcvt.s32.f32 %v135
    %v144 = vcvt.s32.f32 %v136
    %v145 = vcvt.s32.f32 %v137
    %v146 = vcvt.s32.f32 %v138
    %v147 = vcvt.s32.f32 %v139
    %v148 = vcvt.s32.f32 %v140
    %v149 = vcvt.s32.f32 %v141
    %vm150 = vmand %vm110, %vm119
    %vm151 = vmand %vm112, %vm121
    %v152 = vsel %vm150, 1, 0
    %v153 = vsel %vm151, 1, 0
    %v154 = vcvt.s32.f32 %v152
    %v155 = vcvt.s32.f32 %v153
    %v156 = vsub.f32 %v154, 1.0
    %v157 = vsub.f32 %v155, 1.0
    %v158 = vmul.f32 %v156, 1e+30
    %v159 = vmul.f32 %v157, 1e+30
    %v160 = vlaneseq
    %v161 = vshrl.u32 %v160, 7
    %v162 = vand.u32 %v109, 15
    %v163 = vmul.u32 %v161, 8
    %vm164 = vcmp.ge.s32.totalorder %v162, %v163
    %v165 = vadd.s32 %v161, 1
    %v166 = vmul.u32 %v165, 8
    %vm167 = vcmp.lt.s32.totalorder %v162, %v166
    %vm168 = vmand %vm164, %vm167
    %v169 = vsel %vm168, 1, 0
    %v170 = vcvt.s32.f32 %v169
    %v171 = vmul.f32 %v170, 0.125
    %v172 = vmul.f32 %v103, %v142
    %v173 = vmul.f32 %v106, %v142
    %v174 = vmul.f32 %v103, %v143
    %v175 = vmul.f32 %v106, %v143
    %v176 = vmul.f32 %v103, %v144
    %v177 = vmul.f32 %v106, %v144
    %v178 = vmul.f32 %v103, %v145
    %v179 = vmul.f32 %v106, %v145
    %v180 = vmul.f32 %v103, %v146
    %v181 = vmul.f32 %v106, %v146
    %v182 = vmul.f32 %v103, %v147
    %v183 = vmul.f32 %v106, %v147
    %v184 = vmul.f32 %v103, %v148
    %v185 = vmul.f32 %v106, %v148
    %v186 = vmul.f32 %v103, %v149
    %v187 = vmul.f32 %v106, %v149
    %190 = vrot.lane.b32.xlu0 %v103, 96
    %v191 = vpop.permute.xlu0 %190
    %192 = vrot.lane.b32.xlu0 %v106, 96
    %v193 = vpop.permute.xlu0 %192
    %v195 = vsel %vm78, %v172, 0
    %v198 = vsel %vm78, %v173, 0
    %v201 = vsel %vm78, %v174, 0
    %v204 = vsel %vm78, %v175, 0
    %v207 = vsel %vm78, %v176, 0
    %v210 = vsel %vm78, %v177, 0
    %v213 = vsel %vm78, %v178, 0
    %v216 = vsel %vm78, %v179, 0
    %v219 = vsel %vm78, %v180, 0
    %v222 = vsel %vm78, %v181, 0
    %v225 = vsel %vm78, %v182, 0
    %v228 = vsel %vm78, %v183, 0
    %v231 = vsel %vm78, %v184, 0
    %v234 = vsel %vm78, %v185, 0
    %v237 = vsel %vm78, %v186, 0
    %v240 = vsel %vm78, %v187, 0
    %v242 = vsel %vm78, %v191, 0
    %v244 = vsel %vm78, %v193, 0
    %246 = vmatpush.xpose.msra.mxu0 0.0
    %247 = vmatpush.xpose.msra.mxu0 0.0
    %248 = vmatpush.xpose.msra.mxu0 0.0
    %249 = vmatpush.xpose.msra.mxu0 0.0
    %250 = vmatpush.xpose.msra.mxu0 0.0
    %251 = vmatpush.xpose.msra.mxu0 0.0
    %252 = vmatpush.xpose.msra.mxu0 0.0
    %253 = vmatpush.xpose.msra.mxu0 0.0
    %254 = vmatpush.xpose.msra.mxu0 0.0
    %255 = vmatpush.xpose.msra.mxu0 0.0
    %256 = vmatpush.xpose.msra.mxu0 0.0
    %257 = vmatpush.xpose.msra.mxu0 0.0
    %258 = vmatpush.xpose.msra.mxu0 0.0
    %259 = vmatpush.xpose.msra.mxu0 0.0
    %260 = vmatpush.xpose.msra.mxu0 %v244
    %261 = vmatpush.xpose.msra.mxu0 %v242
    %262 = vmatmul.f32.gmra.mxu0 %v195
    %v263 = vpop.f32.mrf.mxu0
    %v264 = vadd.f32 %v158, %v263
    %265 = vmatmul.f32.gmra.mxu0 %v198
    %v266 = vpop.f32.mrf.mxu0
    %v267 = vadd.f32 %v159, %v266
    %268 = vmatmul.f32.gmra.mxu0 %v201
    %v269 = vpop.f32.mrf.mxu0
    %v270 = vadd.f32 %v158, %v269
    %271 = vmatmul.f32.gmra.mxu0 %v204
    %v272 = vpop.f32.mrf.mxu0
    %v273 = vadd.f32 %v159, %v272
    %274 = vmatmul.f32.gmra.mxu0 %v207
    %v275 = vpop.f32.mrf.mxu0
    %v276 = vadd.f32 %v158, %v275
    %277 = vmatmul.f32.gmra.mxu0 %v210
    %v278 = vpop.f32.mrf.mxu0
    %v279 = vadd.f32 %v159, %v278
    %280 = vmatmul.f32.gmra.mxu0 %v213
    %v281 = vpop.f32.mrf.mxu0
    %v282 = vadd.f32 %v158, %v281
    %283 = vmatmul.f32.gmra.mxu0 %v216
    %v284 = vpop.f32.mrf.mxu0
    %v285 = vadd.f32 %v159, %v284
    %286 = vmatmul.f32.gmra.mxu0 %v219
    %v287 = vpop.f32.mrf.mxu0
    %v288 = vadd.f32 %v158, %v287
    %289 = vmatmul.f32.gmra.mxu0 %v222
    %v290 = vpop.f32.mrf.mxu0
    %v291 = vadd.f32 %v159, %v290
    %292 = vmatmul.f32.gmra.mxu0 %v225
    %v293 = vpop.f32.mrf.mxu0
    %v294 = vadd.f32 %v158, %v293
    %295 = vmatmul.f32.gmra.mxu0 %v228
    %v296 = vpop.f32.mrf.mxu0
    %v297 = vadd.f32 %v159, %v296
    %298 = vmatmul.f32.gmra.mxu0 %v231
    %v299 = vpop.f32.mrf.mxu0
    %v300 = vadd.f32 %v158, %v299
    %301 = vmatmul.f32.gmra.mxu0 %v234
    %v302 = vpop.f32.mrf.mxu0
    %v303 = vadd.f32 %v159, %v302
    %304 = vmatmul.f32.gmra.mxu0 %v237
    %v305 = vpop.f32.mrf.mxu0
    %v306 = vadd.f32 %v158, %v305
    %307 = vmatmul.f32.gmra.mxu0 %v240
    %v308 = vpop.f32.mrf.mxu0
    %v309 = vadd.f32 %v159, %v308
    %310 = vdwg.mxu0
    %vm311 = vcmask 130048
    %v312 = vsel %vm311, %v264, -inf
    %313 = vmax.xlane.f32.xlu0 %v312
    %v314 = vpop.xlane.xlu0 %313
    %v315 = vsel %vm311, %v267, -inf
    %316 = vmax.xlane.f32.xlu0 %v315
    %v317 = vpop.xlane.xlu0 %316
    %v318 = vsel %vm311, %v270, -inf
    %319 = vmax.xlane.f32.xlu0 %v318
    %v320 = vpop.xlane.xlu0 %319
    %v321 = vsel %vm311, %v273, -inf
    %322 = vmax.xlane.f32.xlu0 %v321
    %v323 = vpop.xlane.xlu0 %322
    %v324 = vsel %vm311, %v276, -inf
    %325 = vmax.xlane.f32.xlu0 %v324
    %v326 = vpop.xlane.xlu0 %325
    %v327 = vsel %vm311, %v279, -inf
    %328 = vmax.xlane.f32.xlu0 %v327
    %v329 = vpop.xlane.xlu0 %328
    %v330 = vsel %vm311, %v282, -inf
    %331 = vmax.xlane.f32.xlu0 %v330
    %v332 = vpop.xlane.xlu0 %331
    %v333 = vsel %vm311, %v285, -inf
    %334 = vmax.xlane.f32.xlu0 %v333
    %v335 = vpop.xlane.xlu0 %334
    %v336 = vsel %vm311, %v288, -inf
    %337 = vmax.xlane.f32.xlu0 %v336
    %v338 = vpop.xlane.xlu0 %337
    %v339 = vsel %vm311, %v291, -inf
    %340 = vmax.xlane.f32.xlu0 %v339
    %v341 = vpop.xlane.xlu0 %340
    %v342 = vsel %vm311, %v294, -inf
    %343 = vmax.xlane.f32.xlu0 %v342
    %v344 = vpop.xlane.xlu0 %343
    %v345 = vsel %vm311, %v297, -inf
    %346 = vmax.xlane.f32.xlu0 %v345
    %v347 = vpop.xlane.xlu0 %346
    %v348 = vsel %vm311, %v300, -inf
    %349 = vmax.xlane.f32.xlu0 %v348
    %v350 = vpop.xlane.xlu0 %349
    %v351 = vsel %vm311, %v303, -inf
    %352 = vmax.xlane.f32.xlu0 %v351
    %v353 = vpop.xlane.xlu0 %352
    %v354 = vsel %vm311, %v306, -inf
    %355 = vmax.xlane.f32.xlu0 %v354
    %v356 = vpop.xlane.xlu0 %355
    %v357 = vsel %vm311, %v309, -inf
    %358 = vmax.xlane.f32.xlu0 %v357
    %v359 = vpop.xlane.xlu0 %358
    %v360 = vsub.f32 %v264, %v314
    %v361 = vsub.f32 %v267, %v317
    %v362 = vsub.f32 %v270, %v320
    %v363 = vsub.f32 %v273, %v323
    %v364 = vsub.f32 %v276, %v326
    %v365 = vsub.f32 %v279, %v329
    %v366 = vsub.f32 %v282, %v332
    %v367 = vsub.f32 %v285, %v335
    %v368 = vsub.f32 %v288, %v338
    %v369 = vsub.f32 %v291, %v341
    %v370 = vsub.f32 %v294, %v344
    %v371 = vsub.f32 %v297, %v347
    %v372 = vsub.f32 %v300, %v350
    %v373 = vsub.f32 %v303, %v353
    %v374 = vsub.f32 %v306, %v356
    %v375 = vsub.f32 %v309, %v359
    %v376 = vmul.f32 %v360, 1.442695
    %v377 = vpow.pop %v376
    %v378 = vmul.f32 %v361, 1.442695
    %v379 = vpow.pop %v378
    %v380 = vmul.f32 %v362, 1.442695
    %v381 = vpow.pop %v380
    %v382 = vmul.f32 %v363, 1.442695
    %v383 = vpow.pop %v382
    %v384 = vmul.f32 %v364, 1.442695
    %v385 = vpow.pop %v384
    %v386 = vmul.f32 %v365, 1.442695
    %v387 = vpow.pop %v386
    %v388 = vmul.f32 %v366, 1.442695
    %v389 = vpow.pop %v388
    %v390 = vmul.f32 %v367, 1.442695
    %v391 = vpow.pop %v390
    %v392 = vmul.f32 %v368, 1.442695
    %v393 = vpow.pop %v392
    %v394 = vmul.f32 %v369, 1.442695
    %v395 = vpow.pop %v394
    %v396 = vmul.f32 %v370, 1.442695
    %v397 = vpow.pop %v396
    %v398 = vmul.f32 %v371, 1.442695
    %v399 = vpow.pop %v398
    %v400 = vmul.f32 %v372, 1.442695
    %v401 = vpow.pop %v400
    %v402 = vmul.f32 %v373, 1.442695
    %v403 = vpow.pop %v402
    %v404 = vmul.f32 %v374, 1.442695
    %v405 = vpow.pop %v404
    %v406 = vmul.f32 %v375, 1.442695
    %v407 = vpow.pop %v406
    %v408 = vsel %vm311, %v377, 0.0
    %409 = vadd.xlane.f32.xlu0 %v408
    %v410 = vpop.xlane.xlu0 %409
    %v411 = vsel %vm311, %v379, 0.0
    %412 = vadd.xlane.f32.xlu0 %v411
    %v413 = vpop.xlane.xlu0 %412
    %v414 = vsel %vm311, %v381, 0.0
    %415 = vadd.xlane.f32.xlu0 %v414
    %v416 = vpop.xlane.xlu0 %415
    %v417 = vsel %vm311, %v383, 0.0
    %418 = vadd.xlane.f32.xlu0 %v417
    %v419 = vpop.xlane.xlu0 %418
    %v420 = vsel %vm311, %v385, 0.0
    %421 = vadd.xlane.f32.xlu0 %v420
    %v422 = vpop.xlane.xlu0 %421
    %v423 = vsel %vm311, %v387, 0.0
    %424 = vadd.xlane.f32.xlu0 %v423
    %v425 = vpop.xlane.xlu0 %424
    %v426 = vsel %vm311, %v389, 0.0
    %427 = vadd.xlane.f32.xlu0 %v426
    %v428 = vpop.xlane.xlu0 %427
    %v429 = vsel %vm311, %v391, 0.0
    %430 = vadd.xlane.f32.xlu0 %v429
    %v431 = vpop.xlane.xlu0 %430
    %v432 = vsel %vm311, %v393, 0.0
    %433 = vadd.xlane.f32.xlu0 %v432
    %v434 = vpop.xlane.xlu0 %433
    %v435 = vsel %vm311, %v395, 0.0
    %436 = vadd.xlane.f32.xlu0 %v435
    %v437 = vpop.xlane.xlu0 %436
    %v438 = vsel %vm311, %v397, 0.0
    %439 = vadd.xlane.f32.xlu0 %v438
    %v440 = vpop.xlane.xlu0 %439
    %v441 = vsel %vm311, %v399, 0.0
    %442 = vadd.xlane.f32.xlu0 %v441
    %v443 = vpop.xlane.xlu0 %442
    %v444 = vsel %vm311, %v401, 0.0
    %445 = vadd.xlane.f32.xlu0 %v444
    %v446 = vpop.xlane.xlu0 %445
    %v447 = vsel %vm311, %v403, 0.0
    %448 = vadd.xlane.f32.xlu0 %v447
    %v449 = vpop.xlane.xlu0 %448
    %v450 = vsel %vm311, %v405, 0.0
    %451 = vadd.xlane.f32.xlu0 %v450
    %v452 = vpop.xlane.xlu0 %451
    %v453 = vsel %vm311, %v407, 0.0
    %454 = vadd.xlane.f32.xlu0 %v453
    %v455 = vpop.xlane.xlu0 %454
    %v456 = vrcp.pop %v410
    %v457 = vrcp.pop %v413
    %v458 = vrcp.pop %v416
    %v459 = vrcp.pop %v419
    %v460 = vrcp.pop %v422
    %v461 = vrcp.pop %v425
    %v462 = vrcp.pop %v428
    %v463 = vrcp.pop %v431
    %v464 = vrcp.pop %v434
    %v465 = vrcp.pop %v437
    %v466 = vrcp.pop %v440
    %v467 = vrcp.pop %v443
    %v468 = vrcp.pop %v446
    %v469 = vrcp.pop %v449
    %v470 = vrcp.pop %v452
    %v471 = vrcp.pop %v455
    %v472 = vmul.f32 %v377, %v456
    %v473 = vmul.f32 %v379, %v457
    %v474 = vmul.f32 %v381, %v458
    %v475 = vmul.f32 %v383, %v459
    %v476 = vmul.f32 %v385, %v460
    %v477 = vmul.f32 %v387, %v461
    %v478 = vmul.f32 %v389, %v462
    %v479 = vmul.f32 %v391, %v463
    %v480 = vmul.f32 %v393, %v464
    %v481 = vmul.f32 %v395, %v465
    %v482 = vmul.f32 %v397, %v466
    %v483 = vmul.f32 %v399, %v467
    %v484 = vmul.f32 %v401, %v468
    %v485 = vmul.f32 %v403, %v469
    %v486 = vmul.f32 %v405, %v470
    %v487 = vmul.f32 %v407, %v471
    %488 = vrot.lane.b32.xlu0 %v103, 64
    %v489 = vpop.permute.xlu0 %488
    %490 = vrot.lane.b32.xlu0 %v106, 64
    %v491 = vpop.permute.xlu0 %490
    %v495 = vsel %vm311, %v472, 0
    %v498 = vsel %vm311, %v473, 0
    %v501 = vsel %vm311, %v474, 0
    %v504 = vsel %vm311, %v475, 0
    %v507 = vsel %vm311, %v476, 0
    %v510 = vsel %vm311, %v477, 0
    %v513 = vsel %vm311, %v478, 0
    %v516 = vsel %vm311, %v479, 0
    %v519 = vsel %vm311, %v480, 0
    %v522 = vsel %vm311, %v481, 0
    %v525 = vsel %vm311, %v482, 0
    %v528 = vsel %vm311, %v483, 0
    %v531 = vsel %vm311, %v484, 0
    %v534 = vsel %vm311, %v485, 0
    %v537 = vsel %vm311, %v486, 0
    %v540 = vsel %vm311, %v487, 0
    %542 = vmatpush.msra.mxu0 0.0
    %543 = vmatpush.msra.mxu0 0.0
    %544 = vmatpush.msra.mxu0 0.0
    %545 = vmatpush.msra.mxu0 0.0
    %546 = vmatpush.msra.mxu0 0.0
    %547 = vmatpush.msra.mxu0 0.0
    %548 = vmatpush.msra.mxu0 0.0
    %549 = vmatpush.msra.mxu0 0.0
    %550 = vmatpush.msra.mxu0 0.0
    %551 = vmatpush.msra.mxu0 0.0
    %552 = vmatpush.msra.mxu0 0.0
    %553 = vmatpush.msra.mxu0 0.0
    %554 = vmatpush.msra.mxu0 0.0
    %555 = vmatpush.msra.mxu0 0.0
    %556 = vmatpush.msra.mxu0 %v491
    %557 = vmatpush.msra.mxu0 %v489
    %558 = vmatmul.f32.gmra.mxu0 %v495
    %v559 = vpop.f32.mrf.mxu0
    %v560 = vadd.f32 0.0, %v559
    %561 = vmatmul.f32.gmra.mxu0 %v498
    %v562 = vpop.f32.mrf.mxu0
    %v563 = vadd.f32 0.0, %v562
    %564 = vmatmul.f32.gmra.mxu0 %v501
    %v565 = vpop.f32.mrf.mxu0
    %v566 = vadd.f32 0.0, %v565
    %567 = vmatmul.f32.gmra.mxu0 %v504
    %v568 = vpop.f32.mrf.mxu0
    %v569 = vadd.f32 0.0, %v568
    %570 = vmatmul.f32.gmra.mxu0 %v507
    %v571 = vpop.f32.mrf.mxu0
    %v572 = vadd.f32 0.0, %v571
    %573 = vmatmul.f32.gmra.mxu0 %v510
    %v574 = vpop.f32.mrf.mxu0
    %v575 = vadd.f32 0.0, %v574
    %576 = vmatmul.f32.gmra.mxu0 %v513
    %v577 = vpop.f32.mrf.mxu0
    %v578 = vadd.f32 0.0, %v577
    %579 = vmatmul.f32.gmra.mxu0 %v516
    %v580 = vpop.f32.mrf.mxu0
    %v581 = vadd.f32 0.0, %v580
    %582 = vmatmul.f32.gmra.mxu0 %v519
    %v583 = vpop.f32.mrf.mxu0
    %v584 = vadd.f32 0.0, %v583
    %585 = vmatmul.f32.gmra.mxu0 %v522
    %v586 = vpop.f32.mrf.mxu0
    %v587 = vadd.f32 0.0, %v586
    %588 = vmatmul.f32.gmra.mxu0 %v525
    %v589 = vpop.f32.mrf.mxu0
    %v590 = vadd.f32 0.0, %v589
    %591 = vmatmul.f32.gmra.mxu0 %v528
    %v592 = vpop.f32.mrf.mxu0
    %v593 = vadd.f32 0.0, %v592
    %594 = vmatmul.f32.gmra.mxu0 %v531
    %v595 = vpop.f32.mrf.mxu0
    %v596 = vadd.f32 0.0, %v595
    %597 = vmatmul.f32.gmra.mxu0 %v534
    %v598 = vpop.f32.mrf.mxu0
    %v599 = vadd.f32 0.0, %v598
    %600 = vmatmul.f32.gmra.mxu0 %v537
    %v601 = vpop.f32.mrf.mxu0
    %v602 = vadd.f32 0.0, %v601
    %603 = vmatmul.f32.gmra.mxu0 %v540
    %v604 = vpop.f32.mrf.mxu0
    %v605 = vadd.f32 0.0, %v604
    %606 = vdwg.mxu0
    %v607 = vmul.f32 %v560, %v142
    %v608 = vmul.f32 %v563, %v142
    %v609 = vmul.f32 %v566, %v143
    %v610 = vmul.f32 %v569, %v143
    %v611 = vmul.f32 %v572, %v144
    %v612 = vmul.f32 %v575, %v144
    %v613 = vmul.f32 %v578, %v145
    %v614 = vmul.f32 %v581, %v145
    %v615 = vmul.f32 %v584, %v146
    %v616 = vmul.f32 %v587, %v146
    %v617 = vmul.f32 %v590, %v147
    %v618 = vmul.f32 %v593, %v147
    %v619 = vmul.f32 %v596, %v148
    %v620 = vmul.f32 %v599, %v148
    %v621 = vmul.f32 %v602, %v149
    %v622 = vmul.f32 %v605, %v149
    %623 = vmatpush.msra.mxu0 %v622
    %624 = vmatpush.msra.mxu0 %v621
    %625 = vmatpush.msra.mxu0 %v620
    %626 = vmatpush.msra.mxu0 %v619
    %627 = vmatpush.msra.mxu0 %v618
    %628 = vmatpush.msra.mxu0 %v617
    %629 = vmatpush.msra.mxu0 %v616
    %630 = vmatpush.msra.mxu0 %v615
    %631 = vmatpush.msra.mxu0 %v614
    %632 = vmatpush.msra.mxu0 %v613
    %633 = vmatpush.msra.mxu0 %v612
    %634 = vmatpush.msra.mxu0 %v611
    %635 = vmatpush.msra.mxu0 %v610
    %636 = vmatpush.msra.mxu0 %v609
    %637 = vmatpush.msra.mxu0 %v608
    %638 = vmatpush.msra.mxu0 %v607
    %639 = vmatmul.f32.gmra.mxu0 %v171
    %v640 = vpop.f32.mrf.mxu0
    %v641 = vadd.f32 0.0, %v640
    %642 = vdwg.mxu0
    %v643 = vld [vmem:[#allocation7] sm:$0xff]
    %v644 = vld [vmem:[#allocation7 + $0x8] sm:$0xff]
    %v645 = vld [vmem:[#allocation7 + $0x10] sm:$0xff]
    %v646 = vld [vmem:[#allocation7 + $0x18] sm:$0xff]
    %v647 = vld [vmem:[%s4] sm:$0x1]
    %v649 = vperm.slane %v647, 0
    %v652 = vsel %vm78, %v641, 0
    %654 = vmatpush.msra.mxu0 0.0
    %655 = vmatpush.msra.mxu0 0.0
    %656 = vmatpush.msra.mxu0 0.0
    %657 = vmatpush.msra.mxu0 0.0
    %658 = vmatpush.msra.mxu0 0.0
    %659 = vmatpush.msra.mxu0 0.0
    %660 = vmatpush.msra.mxu0 0.0
    %661 = vmatpush.msra.mxu0 0.0
    %662 = vmatpush.msra.mxu0 0.0
    %663 = vmatpush.msra.mxu0 0.0
    %664 = vmatpush.msra.mxu0 0.0
    %665 = vmatpush.msra.mxu0 0.0
    %666 = vmatpush.msra.mxu0 %v646
    %667 = vmatpush.msra.mxu0 %v645
    %668 = vmatpush.msra.mxu0 %v644
    %669 = vmatpush.msra.mxu0 %v643
    %670 = vmatmul.f32.gmra.mxu0 %v652
    %v671 = vpop.f32.mrf.mxu0
    %v672 = vadd.f32 %v649, %v671
    %673 = vdwg.mxu0
    %v674 = vtanh.pop %v672
    %v676 = vrot.slane %v674, 1
    %v677 = vperm.slane %v674, 0
    %v678 = vperm.slane %v676, 0
    %v681 = vmul.f32 %v68, %v677
    %v682 = vmul.f32 %v69, %v678
    %v683 = vsel %vm78, %v681, 0.0
    %684 = vadd.xlane.f32.xlu0 %v683
    %v685 = vpop.xlane.xlu0 %684
    %v686 = vsel %vm78, %v682, 0.0
    %687 = vadd.xlane.f32.xlu0 %v686
    %v688 = vpop.xlane.xlu0 %687
    %v689 = vxor.u32 %v685, 2147483648
    %v690 = vxor.u32 %v688, 2147483648
    %v691 = vmul.f32 %v689, 1.442695
    %v692 = vpow.pop %v691
    %v693 = vmul.f32 %v690, 1.442695
    %v694 = vpow.pop %v693
    %v695 = vadd.f32 %v692, 1.0
    %v696 = vadd.f32 %v694, 1.0
    %v697 = vrcp.pop %v695
    %v698 = vmul.f32 %v695, %v697
    %v699 = vsub.f32 1.0, %v698
    %v700 = vmul.f32 %v697, %v699
    %v701 = vadd.f32 %v697, %v700
    %vm702 = vweird.f32 %v695
    %vm703 = vweird.f32 %v697
    %vm704 = vmor %vm702, %vm703
    %v705 = vsel %vm704, %v697, %v701
    %v706 = vand.u32 2147483647, %v695
    %vm707 = vcmp.eq.f32.partialorder %v706, 8.507059e+37
    %v708 = vand.u32 %v695, 2147483648
    %v709 = vor.u32 1.1754944e-38, %v708
    %v710 = vsel %vm707, %v709, %v705
    %v711 = vmul.f32 1.0, %v710
    %v712 = vrcp.pop %v696
    %v713 = vmul.f32 %v696, %v712
    %v714 = vsub.f32 1.0, %v713
    %v715 = vmul.f32 %v712, %v714
    %v716 = vadd.f32 %v712, %v715
    %vm717 = vweird.f32 %v696
    %vm718 = vweird.f32 %v712
    %vm719 = vmor %vm717, %vm718
    %v720 = vsel %vm719, %v712, %v716
    %v721 = vand.u32 2147483647, %v696
    %vm722 = vcmp.eq.f32.partialorder %v721, 8.507059e+37
    %v723 = vand.u32 %v696, 2147483648
    %v724 = vor.u32 1.1754944e-38, %v723
    %v725 = vsel %vm722, %v724, %v720
    %v726 = vmul.f32 1.0, %v725
    %v727 = vmul.f32 %v68, %v711
    %v728 = vmul.f32 %v69, %v726
    %v729 = vsel %vm78, %v727, 0.0
    %v730 = vrot.slane %v729, 4
    %v731 = vadd.f32 %v729, %v730
    %v732 = vrot.slane %v731, 2
    %v733 = vadd.f32 %v731, %v732
    %v734 = vrot.slane %v733, 1
    %v735 = vadd.f32 %v733, %v734
    %v736 = vsel %vm78, %v728, 0.0
    %v737 = vrot.slane %v736, 4
    %v738 = vadd.f32 %v736, %v737
    %v739 = vrot.slane %v738, 2
    %v740 = vadd.f32 %v738, %v739
    %v741 = vrot.slane %v740, 1
    %v742 = vadd.f32 %v740, %v741
    %vm745 = vcmask 1041409
    %v746 = vsel %vm745, %v742, %v735
    %vm748 = vcmask 254976
    %749 = vst.msk [vmem:[#allocation8] sm:$0x3] %vm748, %v746
    // Predicated region
    $region34: #{multihead_attention_module.1} parent=1 // pred_check
      _
    $region35: #{multihead_attention_module.1} parent=1 // pred_check_branch
      %751 = sbr.rel (0) target = $region37
    $region36: #{multihead_attention_module.1} parent=1 // pred_region
      %753 = vsyncadd [#allocation4], 0
      %s755 = sshll.u32 [#allocation8], 4
      %s756 = int_to_ptr.vmem [resolvable:$true] %s755
      %s757 = sshll.u32 %s5, 4
      %s758 = int_to_ptr.hbm [resolvable:$true] %s757
      %760 = dma.vmem_to_hbm [thread:$0]  %s756, 32, %s758, [#allocation4]
    $region37: #{multihead_attention_module.1} parent=1 // pred_fallthru
      _
    // Predicated region
    $region38: #{multihead_attention_module.1} parent=1 // pred_check
      _
    $region39: #{multihead_attention_module.1} parent=1 // pred_check_branch
      %762 = sbr.rel (0) target = $region41
    $region40: #{multihead_attention_module.1} parent=1 // pred_region
      %764 = dma.done [#allocation4], 32
    $region41: #{multihead_attention_module.1} parent=1 // pred_fallthru
      _
    %765 = vsyncpa [#allocation3], 1
    %766 = vsyncpa [#allocation6], 1
    %767 = vsyncpa [#allocation4], 1

</llo_original>
